<compile_context>
chip_gen: v5e
topology: v5e:2x2
jax: 0.10.0
libtpu: 0.0.40
codegen_flags: <defaults>
</compile_context>

<pallas_src>
import functools

import numpy as np
import jax
import jax.numpy as jnp
from jax import lax
from jax.experimental import pallas as pl
from jax.experimental.pallas import tpu as pltpu


# ---------------------------------------------------------------------------
# 1) Fused LSLR inner loop (LSLRGradientDescentLearningRule.update_params,
#    applied sequentially for all inner steps of all tasks in one launch)
# ---------------------------------------------------------------------------
def _lslr_inner_loop_kernel(num_steps, lr_ref, w_ref, g_ref, out_ref):
    # w_ref   : [rb, 128]            initial (shared) parameter rows
    # g_ref   : [S, rb, 128]         per-step grads for this task / row block
    # out_ref : [rb, 128]            per-task final parameter rows
    out_ref[...] = w_ref[...]

    def body(s, carry):
        out_ref[...] = out_ref[...] - lr_ref[s] * g_ref[s]
        return carry

    # short, fixed trip count -> fully unrolled for LLO scheduler visibility
    lax.fori_loop(0, num_steps, body, None, unroll=True)


def lslr_inner_loop(old_params, grads, lr_table, *, row_block=512):
    """old_params: [P] f32, grads: [T, S, P] f32, lr_table: [S+1] f32.
    Returns [T, P]: parameters of each task after S sequential LSLR steps."""
    T, S, P = grads.shape
    lanes = 128
    # Pad P to a multiple of 8*128 so the row axis tiles cleanly (the padded
    # tail has zero grads and is sliced off on return).
    pad = (-P) % (8 * lanes)
    if pad:
        old_params = jnp.pad(old_params, (0, pad))
        grads = jnp.pad(grads, ((0, 0), (0, 0), (0, pad)))
    Pp = P + pad
    R = Pp // lanes

    # Row tiling keeps VMEM bounded if P scales to millions of params
    # (v7x: 64 MiB physical VMEM); at the test size rb == R and the row grid
    # axis has extent 1.
    rb = row_block if (R > row_block and R % row_block == 0) else R

    w2 = old_params.reshape(R, lanes)
    g4 = grads.reshape(T, S, R, lanes)

    kernel = functools.partial(_lslr_inner_loop_kernel, S)
    out = pl.pallas_call(
        kernel,
        out_shape=jax.ShapeDtypeStruct((T, R, lanes), jnp.float32),
        grid_spec=pltpu.PrefetchScalarGridSpec(
            num_scalar_prefetch=1,                     # lr_table -> SMEM
            grid=(T, R // rb),
            in_specs=[
                pl.BlockSpec((rb, lanes), lambda t, r, lr: (r, 0)),
                pl.BlockSpec((None, S, rb, lanes), lambda t, r, lr: (t, 0, r, 0)),
            ],
            out_specs=pl.BlockSpec((None, rb, lanes), lambda t, r, lr: (t, r, 0)),
        ),
        compiler_params=pltpu.CompilerParams(
            # independent tasks / row blocks -> shard across TCs on v7x
            dimension_semantics=("parallel", "parallel")),
    )(lr_table, w2, g4)
    return out.reshape(T, Pp)[:, :P]


# ---------------------------------------------------------------------------
# 2) Fused MultiHeadAttention task weighting + loss / metric combination
# ---------------------------------------------------------------------------
def _attention_loss_kernel(emb_ref, wv_ref, bv_ref, wo_ref, bo_ref,
                           losses_ref, metrics_ref, imp_ref,
                           weights_ref, total_loss_ref, task_loss_ref,
                           total_eval_ref):
    x = emb_ref[...]                                              # [T, H]
    # MAML_wrapper calls the attention with a 2-D [T, H] tensor, so after
    # .view(batch, -1, heads, d) the per-head sequence length is 1.  The
    # softmax over a length-1 key axis is identically 1 -> attn_probs @ v == v,
    # so linear_q / linear_k / scale cannot affect the output and are skipped.
    # att_dropout is the identity in a deterministic (eval) forward.
    v = jnp.dot(x, wv_ref[...], preferred_element_type=jnp.float32) + bv_ref[...]
    logits = (jnp.dot(v, wo_ref[...], preferred_element_type=jnp.float32)
              + bo_ref[...])                                      # [T, 1]
    # softmax over dim=0 (tasks)
    m = jnp.max(logits, axis=0, keepdims=True)
    e = jnp.exp(logits - m)
    w = e / jnp.sum(e, axis=0, keepdims=True)                     # [T, 1]
    weights_ref[...] = w
    # per-task multi-step loss:  sum_s importance[s] * step_loss[t, s]
    tl = jnp.sum(losses_ref[...] * imp_ref[...], axis=1, keepdims=True)  # [T,1]
    task_loss_ref[...] = tl
    # total_loss = torch.dot(torch.stack(total_loss), task_loss_weight)
    total_loss_ref[...] = jnp.sum(tl * w, axis=0, keepdims=True)
    # total_eval = per-task mean of the (detached) per-step metrics
    total_eval_ref[...] = jnp.mean(metrics_ref[...], axis=1, keepdims=True)


def attention_weighted_task_loss(emb, step_losses, step_metrics, importance,
                                 wv, bv, wo, bo):
    T, H = emb.shape
    S = step_losses.shape[1]
    vmem = pl.BlockSpec(memory_space=pltpu.MemorySpace.VMEM)
    weights, total_loss, task_loss, total_eval = pl.pallas_call(
        _attention_loss_kernel,
        out_shape=(jax.ShapeDtypeStruct((T, 1), jnp.float32),
                   jax.ShapeDtypeStruct((1, 1), jnp.float32),
                   jax.ShapeDtypeStruct((T, 1), jnp.float32),
                   jax.ShapeDtypeStruct((T, 1), jnp.float32)),
        in_specs=[vmem] * 8,
        out_specs=(vmem, vmem, vmem, vmem),
    )(emb, wv, bv, wo, bo, step_losses, step_metrics,
      importance.reshape(1, S))
    return weights[:, 0], total_loss[0, 0], task_loss[:, 0], total_eval[:, 0]


# ---------------------------------------------------------------------------
# MAML glue (faithful numpy/JAX translation of the control logic)
# ---------------------------------------------------------------------------
def get_per_step_loss_importance_vector(num_inner_steps, num_epochs, epoch):
    loss_weights = np.ones(shape=num_inner_steps) * (1.0 / num_inner_steps)
    decay_rate = 1.0 / num_inner_steps / num_epochs
    min_value_for_non_final_losses = 0.03 / num_inner_steps
    for i in range(len(loss_weights) - 1):
        loss_weights[i] = np.maximum(loss_weights[i] - epoch * decay_rate,
                                     min_value_for_non_final_losses)
    loss_weights[-1] = np.minimum(
        loss_weights[-1] + epoch * (num_inner_steps - 1) * decay_rate,
        1.0 - (num_inner_steps - 1) * min_value_for_non_final_losses)
    return jnp.asarray(loss_weights, dtype=jnp.float32)


def _init_linear(kw, kb, fan_in, fan_out):
    bound = 1.0 / np.sqrt(fan_in)
    W = jax.random.uniform(kw, (fan_in, fan_out), minval=-bound, maxval=bound,
                           dtype=jnp.float32)          # stored as [in, out]
    b = jax.random.uniform(kb, (1, fan_out), minval=-bound, maxval=bound,
                           dtype=jnp.float32)
    return W, b


if __name__ == "__main__":
    # Small, deterministic configuration consistent with the module.
    T = 8                 # number of tasks = len(batch) // 2
    H = 32                # embedding_dim * len(hidden_dims)
    num_heads = 8
    num_inner_steps = 4
    num_epoch = 10
    current_epoch = 3
    task_lr = 0.001
    P = 1000              # flattened trainable params (not lane aligned on
                          # purpose: exercises the padding path)

    key = jax.random.PRNGKey(0)
    keys = jax.random.split(key, 16)

    # MultiHeadAttention parameters.  linear_q / linear_k exist in the module
    # but are mathematically dead for the 2-D (seq-len-1) call, so they are
    # initialized here for fidelity and not passed to the kernel.
    wq, bq = _init_linear(keys[0], keys[1], H, H)
    wk, bk = _init_linear(keys[2], keys[3], H, H)
    wv, bv = _init_linear(keys[4], keys[5], H, H)
    wo, bo = _init_linear(keys[6], keys[7], H, 1)

    # LSLR per-step learning-rate table (single flattened parameter group).
    lr_table = jnp.ones((num_inner_steps + 1,), jnp.float32) * task_lr

    # TODO(synk): self.task (graph model forward), torch.autograd.grad and the
    # torchdrug graph construction have no Pallas equivalent; inner-loop
    # gradients, per-step query losses/metrics and graph embeddings are
    # synthesized deterministically instead.
    old_params = jax.random.normal(keys[8], (P,), jnp.float32)
    grads = jax.random.normal(keys[9], (T, num_inner_steps, P), jnp.float32) * 0.1
    step_losses = jax.random.uniform(keys[10], (T, num_inner_steps), jnp.float32)
    step_metrics = jax.random.uniform(keys[11], (T, num_inner_steps), jnp.float32)
    task_embs = jax.random.normal(keys[12], (T, H), jnp.float32)  # sum_emb4weight

    importance = get_per_step_loss_importance_vector(
        num_inner_steps, num_epoch, current_epoch)

    # --- fused LSLR inner loop: one launch for all T tasks x S steps --------
    final_params = lslr_inner_loop(old_params, grads, lr_table)     # [T, P]

    # --- fused attention task weighting + loss/metric combination ----------
    task_weights, total_loss, task_losses, total_eval = \
        attention_weighted_task_loss(task_embs, step_losses, step_metrics,
                                     importance, wv, bv, wo, bo)

    jax.block_until_ready((final_params, task_weights, total_loss,
                           task_losses, total_eval))

    # Light correctness check of the sequential LSLR update (exact order kept).
    ref = jnp.broadcast_to(old_params, (T, P))
    for s in range(num_inner_steps):
        ref = ref - lr_table[s] * grads[:, s, :]
    np.testing.assert_allclose(np.asarray(final_params), np.asarray(ref),
                               rtol=1e-6, atol=1e-6)

    print("KERNEL_OK")
</pallas_src>

<mosaic_0001>
module attributes {stable_mosaic.version = 11 : i64} {
  func.func @_lslr_inner_loop_kernel(%arg0: i32, %arg1: i32, %arg2: memref<5xf32, #tpu.memory_space<smem>>, %arg3: memref<8x128xf32, #tpu.memory_space<vmem>>, %arg4: memref<1x4x8x128xf32, #tpu.memory_space<vmem>>, %arg5: memref<1x8x128xf32, #tpu.memory_space<vmem>>) attributes {dimension_semantics = [#tpu.dimension_semantics<parallel>, #tpu.dimension_semantics<parallel>], iteration_bounds = array<i64: 8, 1>, scalar_prefetch = 1 : i64, scratch_operands = 0 : i64, tpu.core_type = #tpu.core_type<tc>, window_params = [{transform_indices = @transform_0, window_bounds = array<i64: 8, 128>}, {transform_indices = @transform_1, window_bounds = array<i64: 1, 4, 8, 128>}, {transform_indices = @transform_2, window_bounds = array<i64: 1, 8, 128>}]} {
    %c0 = arith.constant 0 : index
    %c0_0 = arith.constant 0 : index
    %0 = vector.load %arg3[%c0, %c0_0] : memref<8x128xf32, #tpu.memory_space<vmem>>, vector<8x128xf32>
    %c0_1 = arith.constant 0 : index
    %c0_2 = arith.constant 0 : index
    %c0_3 = arith.constant 0 : index
    %1 = vector.load %arg5[%c0_1, %c0_2, %c0_3] : memref<1x8x128xf32, #tpu.memory_space<vmem>>, vector<1x8x128xf32>
    %2 = vector.shape_cast %1 : vector<1x8x128xf32> to vector<8x128xf32>
    %3 = vector.shape_cast %0 : vector<8x128xf32> to vector<1x8x128xf32>
    tpu.vector_store %arg5[%c0_1, %c0_2, %c0_3], %3 {strides = array<i32>} : memref<1x8x128xf32, #tpu.memory_space<vmem>>, vector<1x8x128xf32>,
    %c0_i32 = arith.constant 0 : i32
    %c0_4 = arith.constant 0 : index
    %c0_5 = arith.constant 0 : index
    %c0_6 = arith.constant 0 : index
    %4 = vector.load %arg5[%c0_4, %c0_5, %c0_6] : memref<1x8x128xf32, #tpu.memory_space<vmem>>, vector<1x8x128xf32>
    %5 = vector.shape_cast %4 : vector<1x8x128xf32> to vector<8x128xf32>
    %6 = arith.index_cast %c0_i32 : i32 to index
    %7 = memref.load %arg2[%6] : memref<5xf32, #tpu.memory_space<smem>>
    %c0_7 = arith.constant 0 : index
    %8 = arith.index_cast %c0_i32 : i32 to index
    %c0_8 = arith.constant 0 : index
    %c0_9 = arith.constant 0 : index
    %9 = vector.load %arg4[%c0_7, %8, %c0_8, %c0_9] : memref<1x4x8x128xf32, #tpu.memory_space<vmem>>, vector<1x1x8x128xf32>
    %10 = vector.shape_cast %9 : vector<1x1x8x128xf32> to vector<8x128xf32>
    %11 = vector.broadcast %7 : f32 to vector<8x128xf32>
    %12 = arith.mulf %11, %10 : vector<8x128xf32>
    %13 = arith.subf %5, %12 : vector<8x128xf32>
    %c0_10 = arith.constant 0 : index
    %c0_11 = arith.constant 0 : index
    %c0_12 = arith.constant 0 : index
    %14 = vector.load %arg5[%c0_10, %c0_11, %c0_12] : memref<1x8x128xf32, #tpu.memory_space<vmem>>, vector<1x8x128xf32>
    %15 = vector.shape_cast %14 : vector<1x8x128xf32> to vector<8x128xf32>
    %16 = vector.shape_cast %13 : vector<8x128xf32> to vector<1x8x128xf32>
    tpu.vector_store %arg5[%c0_10, %c0_11, %c0_12], %16 {strides = array<i32>} : memref<1x8x128xf32, #tpu.memory_space<vmem>>, vector<1x8x128xf32>,
    %c1_i32 = arith.constant 1 : i32
    %c0_13 = arith.constant 0 : index
    %c0_14 = arith.constant 0 : index
    %c0_15 = arith.constant 0 : index
    %17 = vector.load %arg5[%c0_13, %c0_14, %c0_15] : memref<1x8x128xf32, #tpu.memory_space<vmem>>, vector<1x8x128xf32>
    %18 = vector.shape_cast %17 : vector<1x8x128xf32> to vector<8x128xf32>
    %19 = arith.index_cast %c1_i32 : i32 to index
    %20 = memref.load %arg2[%19] : memref<5xf32, #tpu.memory_space<smem>>
    %c0_16 = arith.constant 0 : index
    %21 = arith.index_cast %c1_i32 : i32 to index
    %c0_17 = arith.constant 0 : index
    %c0_18 = arith.constant 0 : index
    %22 = vector.load %arg4[%c0_16, %21, %c0_17, %c0_18] : memref<1x4x8x128xf32, #tpu.memory_space<vmem>>, vector<1x1x8x128xf32>
    %23 = vector.shape_cast %22 : vector<1x1x8x128xf32> to vector<8x128xf32>
    %24 = vector.broadcast %20 : f32 to vector<8x128xf32>
    %25 = arith.mulf %24, %23 : vector<8x128xf32>
    %26 = arith.subf %18, %25 : vector<8x128xf32>
    %c0_19 = arith.constant 0 : index
    %c0_20 = arith.constant 0 : index
    %c0_21 = arith.constant 0 : index
    %27 = vector.load %arg5[%c0_19, %c0_20, %c0_21] : memref<1x8x128xf32, #tpu.memory_space<vmem>>, vector<1x8x128xf32>
    %28 = vector.shape_cast %27 : vector<1x8x128xf32> to vector<8x128xf32>
    %29 = vector.shape_cast %26 : vector<8x128xf32> to vector<1x8x128xf32>
    tpu.vector_store %arg5[%c0_19, %c0_20, %c0_21], %29 {strides = array<i32>} : memref<1x8x128xf32, #tpu.memory_space<vmem>>, vector<1x8x128xf32>,
    %c2_i32 = arith.constant 2 : i32
    %c0_22 = arith.constant 0 : index
    %c0_23 = arith.constant 0 : index
    %c0_24 = arith.constant 0 : index
    %30 = vector.load %arg5[%c0_22, %c0_23, %c0_24] : memref<1x8x128xf32, #tpu.memory_space<vmem>>, vector<1x8x128xf32>
    %31 = vector.shape_cast %30 : vector<1x8x128xf32> to vector<8x128xf32>
    %32 = arith.index_cast %c2_i32 : i32 to index
    %33 = memref.load %arg2[%32] : memref<5xf32, #tpu.memory_space<smem>>
    %c0_25 = arith.constant 0 : index
    %34 = arith.index_cast %c2_i32 : i32 to index
    %c0_26 = arith.constant 0 : index
    %c0_27 = arith.constant 0 : index
    %35 = vector.load %arg4[%c0_25, %34, %c0_26, %c0_27] : memref<1x4x8x128xf32, #tpu.memory_space<vmem>>, vector<1x1x8x128xf32>
    %36 = vector.shape_cast %35 : vector<1x1x8x128xf32> to vector<8x128xf32>
    %37 = vector.broadcast %33 : f32 to vector<8x128xf32>
    %38 = arith.mulf %37, %36 : vector<8x128xf32>
    %39 = arith.subf %31, %38 : vector<8x128xf32>
    %c0_28 = arith.constant 0 : index
    %c0_29 = arith.constant 0 : index
    %c0_30 = arith.constant 0 : index
    %40 = vector.load %arg5[%c0_28, %c0_29, %c0_30] : memref<1x8x128xf32, #tpu.memory_space<vmem>>, vector<1x8x128xf32>
    %41 = vector.shape_cast %40 : vector<1x8x128xf32> to vector<8x128xf32>
    %42 = vector.shape_cast %39 : vector<8x128xf32> to vector<1x8x128xf32>
    tpu.vector_store %arg5[%c0_28, %c0_29, %c0_30], %42 {strides = array<i32>} : memref<1x8x128xf32, #tpu.memory_space<vmem>>, vector<1x8x128xf32>,
    %c3_i32 = arith.constant 3 : i32
    %c0_31 = arith.constant 0 : index
    %c0_32 = arith.constant 0 : index
    %c0_33 = arith.constant 0 : index
    %43 = vector.load %arg5[%c0_31, %c0_32, %c0_33] : memref<1x8x128xf32, #tpu.memory_space<vmem>>, vector<1x8x128xf32>
    %44 = vector.shape_cast %43 : vector<1x8x128xf32> to vector<8x128xf32>
    %45 = arith.index_cast %c3_i32 : i32 to index
    %46 = memref.load %arg2[%45] : memref<5xf32, #tpu.memory_space<smem>>
    %c0_34 = arith.constant 0 : index
    %47 = arith.index_cast %c3_i32 : i32 to index
    %c0_35 = arith.constant 0 : index
    %c0_36 = arith.constant 0 : index
    %48 = vector.load %arg4[%c0_34, %47, %c0_35, %c0_36] : memref<1x4x8x128xf32, #tpu.memory_space<vmem>>, vector<1x1x8x128xf32>
    %49 = vector.shape_cast %48 : vector<1x1x8x128xf32> to vector<8x128xf32>
    %50 = vector.broadcast %46 : f32 to vector<8x128xf32>
    %51 = arith.mulf %50, %49 : vector<8x128xf32>
    %52 = arith.subf %44, %51 : vector<8x128xf32>
    %c0_37 = arith.constant 0 : index
    %c0_38 = arith.constant 0 : index
    %c0_39 = arith.constant 0 : index
    %53 = vector.load %arg5[%c0_37, %c0_38, %c0_39] : memref<1x8x128xf32, #tpu.memory_space<vmem>>, vector<1x8x128xf32>
    %54 = vector.shape_cast %53 : vector<1x8x128xf32> to vector<8x128xf32>
    %55 = vector.shape_cast %52 : vector<8x128xf32> to vector<1x8x128xf32>
    tpu.vector_store %arg5[%c0_37, %c0_38, %c0_39], %55 {strides = array<i32>} : memref<1x8x128xf32, #tpu.memory_space<vmem>>, vector<1x8x128xf32>,
    %c4_i32 = arith.constant 4 : i32
    return
  }
  func.func @transform_0(%arg0: i32, %arg1: i32, %arg2: memref<5xf32, #tpu.memory_space<smem>>) -> (i32, i32) {
    %c0_i32 = arith.constant 0 : i32
    %c0_i32_0 = arith.constant 0 : i32
    return %arg1, %c0_i32 : i32, i32
  }
  func.func @transform_1(%arg0: i32, %arg1: i32, %arg2: memref<5xf32, #tpu.memory_space<smem>>) -> (i32, i32, i32, i32) {
    %c0_i32 = arith.constant 0 : i32
    %c0_i32_0 = arith.constant 0 : i32
    %c0_i32_1 = arith.constant 0 : i32
    return %arg0, %c0_i32, %arg1, %c0_i32_0 : i32, i32, i32, i32
  }
  func.func @transform_2(%arg0: i32, %arg1: i32, %arg2: memref<5xf32, #tpu.memory_space<smem>>) -> (i32, i32, i32) {
    %c0_i32 = arith.constant 0 : i32
    %c0_i32_0 = arith.constant 0 : i32
    return %arg0, %arg1, %c0_i32 : i32, i32, i32
  }
}

</mosaic_0001>

<llo_original>
// kernel: tpu_custom_call.1
$region0: #{tpu_custom_call.1}
  #allocation0 [shape = 'u32[]', space=smem, size = 0x4, offset = 0x4, fixed_abs, tag = 'smem constant byte address 0x4 - core index']
  #allocation1 [shape = 'u32[72,128]{1,0:T(1,128)}', space=vmem, size = 0x9000, scoped, tag = 'internal scratch']
  #allocation2 [shape = 's32[1]{0}', space=sflag, size = 0x4, scoped, tag = 'scoped memory for tpu_custom_call.1']
  #allocation3 [shape = 'u8[512]{0}', space=smem, size = 0x200, scoped, tag = 'prefetched SMEM operand 0']
  %s0 = inlined_call_operand.hbm [shape: f32[5], index: 0, kind: input, shape index: {}]
  %s1 = inlined_call_operand.hbm [shape: f32[8,128], index: 1, kind: input, shape index: {}]
  %s2 = inlined_call_operand.hbm [shape: f32[8,4,8,128], index: 2, kind: input, shape index: {}]
  %s3 = inlined_call_operand.hbm [shape: f32[8,8,128], index: 3, kind: output, shape index: {}]
  %s4 = sld [smem:[#allocation0]]
  $region49: #{tpu_custom_call.1} parent=0
    _
  %s6 = ssub.s32 1, %s4
  %s7 = scalar_select 0, %s6, %s4
  %s9 = sshll.u32 %s0, 4
  %s10 = int_to_ptr.hbm [resolvable:$true] %s9
  %12 = dma.hbm_to_smem %s10, 16, [#allocation3], [#allocation2]
  %14 = dma.done [#allocation2], 16
  %15 = sfence
  $region1: #{tpu_custom_call.1} parent=0
    #allocation4 [shape = 'u8[4096]{0}', space=vmem, size = 0x1000, scoped, tag = 'input window, operand 1, single buffered']
    #allocation5 [shape = 's32[2]{0}', space=sflag, size = 0x8, scoped, tag = 'scoped memory for tpu_custom_call.1']
    #allocation6 [shape = 's32[2]{0}', space=sflag, size = 0x8, scoped, tag = 'scoped memory for tpu_custom_call.1']
    #allocation7 [shape = 'u8[32768]{0}', space=vmem, size = 0x8000, scoped, tag = 'input window, operand 2']
    #allocation8 [shape = 's32[2]{0}', space=sflag, size = 0x8, scoped, tag = 'scoped memory for tpu_custom_call.1']
    #allocation9 [shape = 'u8[8192]{0}', space=vmem, size = 0x2000, scoped, tag = 'output window, operand 0']
    %16 = vsyncpa [#allocation5], 0
    %17 = vsyncpa [#allocation8], 0
    %s18 = scalar_lea.sflag [#allocation8], 1
    %19 = vsyncpa %s18, 0
    %20 = vsyncpa [#allocation6], 0
    %s21 = scalar_lea.sflag [#allocation6], 1
    %22 = vsyncpa %s21, 0
    loop: start=0, step=1, limit=10
    $region2: #{tpu_custom_call.1} parent=1 // loop_pre_header
      _
    $region3: #{tpu_custom_call.1} parent=1 // loop_header
      %s24 = sphi 0, %s28
      %p25 = scmp.ge.s32.totalorder %s24, 10
      %s31 = sphi 0, %s43
      %s32 = sphi 0, %s39
      %s33 = sphi 0, %s31
      %s34 = sphi 0, %s32
      %s35 = sphi 0, %s33
      %s36 = sphi 0, %s34
      %s46 = sphi 0, %s48
      %s49 = sphi 0, %s46
      %s50 = sphi 0, %s49
      %s66 = sphi 0, %s50
      %s74 = sphi 0, %s76
      %s77 = sphi 0, %s74
      %s78 = sphi 0, %s77
      %s94 = sphi 0, %s78
      %s102 = sphi 0, %s104
      %s105 = sphi 0, %s102
      %s106 = sphi 0, %s105
      %s122 = sphi 0, %s106
    $region4: #{tpu_custom_call.1} parent=1 // loop_header_branch
      %27 = sbr.rel (%p25) target = $region8
    $region5: #{tpu_custom_call.1} parent=1 // loop_body
      %s29 = ssub.s32 %s24, 1
      %s30 = ssub.s32 %s24, 2
      %s37 = sadd.s32 1, %s32
      %p38 = scmp.ge.s32.totalorder %s37, 1
      %s39 = scalar_select %p38, 0, %s37
      %s40 = sadd.s32 1, %s31
      %s41 = scalar_select %p38, %s40, %s31
      %p42 = scmp.ge.s32.totalorder %s41, 8
      %s43 = scalar_select %p42, 0, %s41
      %s44 = ssub.s32 %s32, %s39
      %p45 = scmp.eq.s32.totalorder %s44, 0
      %s47 = sadd.s32 %s46, 1
      %s48 = scalar_select %p45, %s46, %s47
      %p51 = pneg %p45
      %p52 = scmp.eq.s32.totalorder %s24, 7
      %p53 = por %p51, %p52
      %p54 = scmp.ne.s32.totalorder %s46, %s49
      %p55 = scmp.eq.s32.totalorder %s24, 0
      %p56 = por %p54, %p55
      %p57 = scmp.ne.s32.totalorder %s46, %s49
      %p58 = scmp.eq.s32.totalorder %s29, 7
      %p59 = por %p57, %p58
      %p60 = scmp.ne.s32.totalorder %s49, %s50
      %p61 = scmp.eq.s32.totalorder %s29, 0
      %p62 = por %p60, %p61
      %p63 = scmp.ne.s32.totalorder %s49, %s50
      %p64 = scmp.eq.s32.totalorder %s30, 7
      %p65 = por %p63, %p64
      %p67 = scmp.ne.s32.totalorder %s50, %s66
      %p68 = scmp.eq.s32.totalorder %s30, 0
      %p69 = por %p67, %p68
      %s70 = ssub.s32 %s31, %s43
      %s71 = ssub.s32 %s32, %s39
      %s72 = sor.u32 %s70, %s71
      %p73 = scmp.eq.s32.totalorder %s72, 0
      %s75 = sadd.s32 %s74, 1
      %s76 = scalar_select %p73, %s74, %s75
      %p79 = pneg %p73
      %p80 = scmp.eq.s32.totalorder %s24, 7
      %p81 = por %p79, %p80
      %p82 = scmp.ne.s32.totalorder %s74, %s77
      %p83 = scmp.eq.s32.totalorder %s24, 0
      %p84 = por %p82, %p83
      %p85 = scmp.ne.s32.totalorder %s74, %s77
      %p86 = scmp.eq.s32.totalorder %s29, 7
      %p87 = por %p85, %p86
      %p88 = scmp.ne.s32.totalorder %s77, %s78
      %p89 = scmp.eq.s32.totalorder %s29, 0
      %p90 = por %p88, %p89
      %p91 = scmp.ne.s32.totalorder %s77, %s78
      %p92 = scmp.eq.s32.totalorder %s30, 7
      %p93 = por %p91, %p92
      %p95 = scmp.ne.s32.totalorder %s78, %s94
      %p96 = scmp.eq.s32.totalorder %s30, 0
      %p97 = por %p95, %p96
      %s98 = ssub.s32 %s31, %s43
      %s99 = ssub.s32 %s32, %s39
      %s100 = sor.u32 %s98, %s99
      %p101 = scmp.eq.s32.totalorder %s100, 0
      %s103 = sadd.s32 %s102, 1
      %s104 = scalar_select %p101, %s102, %s103
      %p107 = pneg %p101
      %p108 = scmp.eq.s32.totalorder %s24, 7
      %p109 = por %p107, %p108
      %p110 = scmp.ne.s32.totalorder %s102, %s105
      %p111 = scmp.eq.s32.totalorder %s24, 0
      %p112 = por %p110, %p111
      %p113 = scmp.ne.s32.totalorder %s102, %s105
      %p114 = scmp.eq.s32.totalorder %s29, 7
      %p115 = por %p113, %p114
      %p116 = scmp.ne.s32.totalorder %s105, %s106
      %p117 = scmp.eq.s32.totalorder %s29, 0
      %p118 = por %p116, %p117
      %p119 = scmp.ne.s32.totalorder %s105, %s106
      %p120 = scmp.eq.s32.totalorder %s30, 7
      %p121 = por %p119, %p120
      %p123 = scmp.ne.s32.totalorder %s106, %s122
      %p124 = scmp.eq.s32.totalorder %s30, 0
      %p125 = por %p123, %p124
      %p126 = scmp.le.s32.totalorder 1, %s24
      %p127 = scmp.lt.s32.totalorder %s24, 9
      %p128 = pnand %p126, %p127
      %p129 = pneg %p128
      // Predicated region
      $region9: #{tpu_custom_call.1} parent=5 // pred_check
        _
      $region10: #{tpu_custom_call.1} parent=5 // pred_check_branch
        %131 = sbr.rel (%p128) target = $region12
      $region11: #{tpu_custom_call.1} parent=5 // pred_region
        %s132 = ssub.s32 %s24, 1
        // Predicated region
        $region13: #{tpu_custom_call.1} parent=11 // pred_check
          %p133 = pneg %p62
        $region14: #{tpu_custom_call.1} parent=11 // pred_check_branch
          %135 = sbr.rel (%p133) target = $region16
        $region15: #{tpu_custom_call.1} parent=11 // pred_region
          %137 = vsyncadd [#allocation5], 0
          %s138 = smul.addr %s34, 8
          %s139 = scalar_lea.hbm %s1, %s138
          %s141 = sshll.u32 %s139, 4
          %s142 = int_to_ptr.hbm [resolvable:$true] %s141
          %s143 = sshll.u32 [#allocation4], 4
          %s144 = int_to_ptr.vmem [resolvable:$true] %s143
          %146 = dma.hbm_to_vmem [thread:$0]  %s142, 128, %s144, [#allocation5]
        $region16: #{tpu_custom_call.1} parent=11 // pred_fallthru
          _
      $region12: #{tpu_custom_call.1} parent=5 // pred_fallthru
        _
      %p147 = scmp.lt.s32.totalorder %s24, 8
      // Predicated region
      $region17: #{tpu_custom_call.1} parent=5 // pred_check
        %p148 = pneg %p147
      $region18: #{tpu_custom_call.1} parent=5 // pred_check_branch
        %150 = sbr.rel (%p148) target = $region20
      $region19: #{tpu_custom_call.1} parent=5 // pred_region
        // Predicated region
        $region21: #{tpu_custom_call.1} parent=19 // pred_check
          %p151 = pneg %p84
        $region22: #{tpu_custom_call.1} parent=19 // pred_check_branch
          %153 = sbr.rel (%p151) target = $region24
        $region23: #{tpu_custom_call.1} parent=19 // pred_region
          %s154 = sand.u32 %s74, 1
          %s155 = scalar_lea.sflag [#allocation8], %s154
          %s156 = sand.u32 %s74, 1
          %s157 = smul.addr %s156, 32
          %s158 = scalar_lea.vmem [#allocation7], %s157
          %160 = vsyncadd %s155, 0
          %s161 = smul.addr %s31, 4
          %s162 = sadd.s32 %s32, %s161
          %s163 = smul.addr %s162, 8
          %s164 = scalar_lea.hbm %s2, %s163
          %s165 = sshll.u32 %s164, 4
          %s166 = int_to_ptr.hbm [resolvable:$true] %s165
          %s167 = sshll.u32 %s158, 4
          %s168 = int_to_ptr.vmem [resolvable:$true] %s167
          %173 = dma.hbm_to_vmem [thread:$0]  %s166, 512, %s168, %s155, 128, 128, 8
        $region24: #{tpu_custom_call.1} parent=19 // pred_fallthru
          _
      $region20: #{tpu_custom_call.1} parent=5 // pred_fallthru
        _
      %p174 = scmp.le.s32.totalorder 1, %s24
      %p175 = scmp.lt.s32.totalorder %s24, 9
      %p176 = pnand %p174, %p175
      %p177 = pneg %p176
      // Predicated region
      $region25: #{tpu_custom_call.1} parent=5 // pred_check
        _
      $region26: #{tpu_custom_call.1} parent=5 // pred_check_branch
        %179 = sbr.rel (%p176) target = $region28
      $region27: #{tpu_custom_call.1} parent=5 // pred_region
        %s180 = ssub.s32 %s24, 1
        // Predicated region
        $region29: #{tpu_custom_call.1} parent=27 // pred_check
          %p181 = pneg %p62
        $region30: #{tpu_custom_call.1} parent=27 // pred_check_branch
          %183 = sbr.rel (%p181) target = $region32
        $region31: #{tpu_custom_call.1} parent=27 // pred_region
          %185 = dma.done [#allocation5], 128
        $region32: #{tpu_custom_call.1} parent=27 // pred_fallthru
          _
        %s186 = sand.u32 %s77, 1
        %s187 = scalar_lea.sflag [#allocation8], %s186
        %s188 = sand.u32 %s77, 1
        %s189 = smul.addr %s188, 32
        %s190 = scalar_lea.vmem [#allocation7], %s189
        // Predicated region
        $region33: #{tpu_custom_call.1} parent=27 // pred_check
          %p191 = pneg %p90
        $region34: #{tpu_custom_call.1} parent=27 // pred_check_branch
          %193 = sbr.rel (%p191) target = $region36
        $region35: #{tpu_custom_call.1} parent=27 // pred_region
          %195 = dma.done %s187, 512
        $region36: #{tpu_custom_call.1} parent=27 // pred_fallthru
          _
        %p196 = pneg %p62
        %p197 = pneg %p59
        %s198 = sand.u32 %s77, 1
        %s199 = scalar_lea.sflag [#allocation8], %s198
        %s200 = sand.u32 %s77, 1
        %s201 = smul.addr %s200, 32
        %s202 = scalar_lea.vmem [#allocation7], %s201
        %p203 = pneg %p90
        %p204 = pneg %p87
        %p205 = pneg %p118
        %p206 = pneg %p115
        %s207 = sand.u32 %s105, 1
        %s208 = scalar_lea.sflag [#allocation6], %s207
        %s209 = sand.u32 %s105, 1
        %s210 = smul.addr %s209, 8
        %s211 = scalar_lea.vmem [#allocation9], %s210
        %v212 = vld [vmem:[#allocation4] sm:$0xff]
        %213 = vst [vmem:[%s211] sm:$0xff] %v212
        %v214 = vld [vmem:[%s211] sm:$0xff]
        %s215 = sld [smem:[#allocation3]]
        %v216 = vld [vmem:[%s190] sm:$0xff]
        %v217 = vstv %s215
        %v218 = vmul.f32 %v217, %v216
        %v219 = vsub.f32 %v214, %v218
        %220 = vst [vmem:[%s211] sm:$0xff] %v219
        %v221 = vld [vmem:[%s211] sm:$0xff]
        %s222 = sld [smem:[#allocation3 + $0x1]]
        %s223 = scalar_lea.vmem %s190, 8 [#allocation7]
        %v224 = vld [vmem:[%s223] sm:$0xff]
        %v225 = vstv %s222
        %v226 = vmul.f32 %v225, %v224
        %v227 = vsub.f32 %v221, %v226
        %228 = vst [vmem:[%s211] sm:$0xff] %v227
        %v229 = vld [vmem:[%s211] sm:$0xff]
        %s230 = sld [smem:[#allocation3 + $0x2]]
        %s231 = scalar_lea.vmem %s190, 16 [#allocation7]
        %v232 = vld [vmem:[%s231] sm:$0xff]
        %v233 = vstv %s230
        %v234 = vmul.f32 %v233, %v232
        %v235 = vsub.f32 %v229, %v234
        %236 = vst [vmem:[%s211] sm:$0xff] %v235
        %v237 = vld [vmem:[%s211] sm:$0xff]
        %s238 = sld [smem:[#allocation3 + $0x3]]
        %s239 = scalar_lea.vmem %s190, 24 [#allocation7]
        %v240 = vld [vmem:[%s239] sm:$0xff]
        %v241 = vstv %s238
        %v242 = vmul.f32 %v241, %v240
        %v243 = vsub.f32 %v237, %v242
        %244 = vst [vmem:[%s211] sm:$0xff] %v243
        %s245 = sand.u32 %s105, 1
        %s246 = scalar_lea.sflag [#allocation6], %s245
        %s247 = sand.u32 %s105, 1
        %s248 = smul.addr %s247, 8
        %s249 = scalar_lea.vmem [#allocation9], %s248
        // Predicated region
        $region37: #{tpu_custom_call.1} parent=27 // pred_check
          %p250 = pneg %p115
        $region38: #{tpu_custom_call.1} parent=27 // pred_check_branch
          %252 = sbr.rel (%p250) target = $region40
        $region39: #{tpu_custom_call.1} parent=27 // pred_region
          %254 = vsyncadd %s246, 0
          %s255 = sadd.s32 %s34, %s33
          %s256 = smul.addr %s255, 8
          %s257 = scalar_lea.hbm %s3, %s256
          %s259 = sshll.u32 %s249, 4
          %s260 = int_to_ptr.vmem [resolvable:$true] %s259
          %s261 = sshll.u32 %s257, 4
          %s262 = int_to_ptr.hbm [resolvable:$true] %s261
          %264 = dma.vmem_to_hbm [thread:$0]  %s260, 128, %s262, %s246
        $region40: #{tpu_custom_call.1} parent=27 // pred_fallthru
          _
      $region28: #{tpu_custom_call.1} parent=5 // pred_fallthru
        _
      %p265 = scmp.le.s32.totalorder 2, %s24
      // Predicated region
      $region41: #{tpu_custom_call.1} parent=5 // pred_check
        %p266 = pneg %p265
      $region42: #{tpu_custom_call.1} parent=5 // pred_check_branch
        %268 = sbr.rel (%p266) target = $region44
      $region43: #{tpu_custom_call.1} parent=5 // pred_region
        %s269 = ssub.s32 %s24, 2
        // Predicated region
        $region45: #{tpu_custom_call.1} parent=43 // pred_check
          %p270 = pneg %p121
        $region46: #{tpu_custom_call.1} parent=43 // pred_check_branch
          %272 = sbr.rel (%p270) target = $region48
        $region47: #{tpu_custom_call.1} parent=43 // pred_region
          %s273 = sand.u32 %s106, 1
          %s274 = scalar_lea.sflag [#allocation6], %s273
          %s275 = sand.u32 %s106, 1
          %s276 = smul.addr %s275, 8
          %s277 = scalar_lea.vmem [#allocation9], %s276
          %279 = dma.done %s274, 128
        $region48: #{tpu_custom_call.1} parent=43 // pred_fallthru
          _
      $region44: #{tpu_custom_call.1} parent=5 // pred_fallthru
        _
    $region6: #{tpu_custom_call.1} parent=1 // loop_footer
      %s28 = sadd.s32 1, %s24
    $region7: #{tpu_custom_call.1} parent=1 // loop_footer_branch
      %23 = sbr.rel target = $region3
    $region8: #{tpu_custom_call.1} parent=1 // loop_exit
      _
    %280 = vsyncpa [#allocation5], 1
    %s281 = scalar_lea.sflag [#allocation5], 1
    %282 = vsyncpa %s281, 1
    %283 = vsyncpa [#allocation8], 1
    %s284 = scalar_lea.sflag [#allocation8], 1
    %285 = vsyncpa %s284, 1
    %286 = vsyncpa [#allocation6], 1
    %s287 = scalar_lea.sflag [#allocation6], 1
    %288 = vsyncpa %s287, 1

</llo_original>
